<compile_context>
chip_gen: v5e
topology: v5e:2x2
jax: 0.10.0
libtpu: 0.0.40
codegen_flags: <defaults>
</compile_context>

<pallas_src>
import jax
import jax.numpy as jnp
from jax.experimental import pallas as pl
from jax.experimental.pallas import tpu as pltpu


# ----------------------------------------------------------------------------
# Pallas kernels
# ----------------------------------------------------------------------------
def _conv_relu_pool_kernel(p_ref, w_ref, b_ref, o_ref):
    # p: (4, K, M) pool-phase im2col patches, w: (C_out, K), b: (C_out, 1)
    # o: (C_out, M) = relu(max_phase(W @ P_phase) + b)   (bias/ReLU commute with max)
    w = w_ref[...]
    acc = jnp.dot(w, p_ref[0], preferred_element_type=jnp.float32)
    for ph in range(1, 4):
        acc = jnp.maximum(
            acc, jnp.dot(w, p_ref[ph], preferred_element_type=jnp.float32))
    o_ref[...] = jnp.maximum(acc + b_ref[...], 0.0)


def _fc_fused_kernel(f_ref, w1_ref, b1_ref, w2_ref, b2_ref, o_ref):
    # f: (N, D), w1: (D, H), b1: (1, H), w2: (H, O), b2: (1, O) -> o: (N, O)
    h = jnp.dot(f_ref[...], w1_ref[...], preferred_element_type=jnp.float32)
    h = jnp.maximum(h + b1_ref[...], 0.0)
    out = jnp.dot(h, w2_ref[...], preferred_element_type=jnp.float32)
    o_ref[...] = out + b2_ref[...]


# ----------------------------------------------------------------------------
# Pallas wrappers (full-array single VMEM block; tiny problem sizes)
# ----------------------------------------------------------------------------
def conv_relu_pool(patches, w, b):
    """patches:(4,K,M), w:(C_out,K), b:(C_out,) -> (C_out, M) pooled activation."""
    P, K, M = patches.shape
    C_out = w.shape[0]
    return pl.pallas_call(
        _conv_relu_pool_kernel,
        out_shape=jax.ShapeDtypeStruct((C_out, M), jnp.float32),
        grid=(1,),
        in_specs=[
            pl.BlockSpec((P, K, M), lambda i: (0, 0, 0)),
            pl.BlockSpec((C_out, K), lambda i: (0, 0)),
            pl.BlockSpec((C_out, 1), lambda i: (0, 0)),
        ],
        out_specs=pl.BlockSpec((C_out, M), lambda i: (0, 0)),
        compiler_params=pltpu.CompilerParams(
            dimension_semantics=("arbitrary",)),
    )(patches, w, b.reshape(C_out, 1))


def fc_fused(f, fw1, fb1, fw2, fb2):
    """relu(f @ fw1.T + fb1) @ fw2.T + fb2 in one kernel (h stays in VMEM)."""
    N, D = f.shape
    H = fw1.shape[0]
    O = fw2.shape[0]
    return pl.pallas_call(
        _fc_fused_kernel,
        out_shape=jax.ShapeDtypeStruct((N, O), jnp.float32),
        grid=(1,),
        in_specs=[
            pl.BlockSpec((N, D), lambda i: (0, 0)),
            pl.BlockSpec((D, H), lambda i: (0, 0)),
            pl.BlockSpec((1, H), lambda i: (0, 0)),
            pl.BlockSpec((H, O), lambda i: (0, 0)),
            pl.BlockSpec((1, O), lambda i: (0, 0)),
        ],
        out_specs=pl.BlockSpec((N, O), lambda i: (0, 0)),
        compiler_params=pltpu.CompilerParams(
            dimension_semantics=("arbitrary",)),
    )(f, fw1.T, fb1.reshape(1, H), fw2.T, fb2.reshape(1, O))


# ----------------------------------------------------------------------------
# Glue: pool-phase im2col (pure slicing/stacking; no extra data vs plain im2col)
# ----------------------------------------------------------------------------
def im2col_pool_phases(x_cnhw, kh, kw):
    """x:(C,N,H,W) -> patches (4, C*kh*kw, N*OHp*OWp) where axis 0 is the 2x2
    pool phase and only the pooled (floor-mode) conv positions are emitted.
    K-ordering (c, kh, kw) matches PyTorch weight.reshape(C_out, C_in*KH*KW)."""
    C, N, H, W = x_cnhw.shape
    OH, OW = H - kh + 1, W - kw + 1
    OHp, OWp = OH // 2, OW // 2
    phases = []
    for p in range(2):
        for q in range(2):
            cols = []
            for c in range(C):
                for di in range(kh):
                    for dj in range(kw):
                        sl = x_cnhw[c, :,
                                    p + di: p + di + 2 * OHp: 2,
                                    q + dj: q + dj + 2 * OWp: 2]  # (N,OHp,OWp)
                        cols.append(sl.reshape(N * OHp * OWp))
            phases.append(jnp.stack(cols, axis=0))  # (K, M)
    return jnp.stack(phases, axis=0), (N, OHp, OWp)  # (4, K, M)


# ----------------------------------------------------------------------------
# SimpleCNN forward (Pallas)
# ----------------------------------------------------------------------------
def simple_cnn_forward(x, params):
    w1, b1, w2, b2, fw1, fb1, fw2, fb2 = params
    N = x.shape[0]

    # conv1 + ReLU + pool1 fused : (N,1,28,28) -> (8, N*13*13)
    x_c = x.transpose(1, 0, 2, 3)                       # (1, N, 28, 28)
    p1, (_, oh1, ow1) = im2col_pool_phases(x_c, 3, 3)   # (4, 9, N*169)
    z1 = conv_relu_pool(p1, w1.reshape(8, 1 * 3 * 3), b1)

    # conv2 + ReLU + pool2 fused : (8,N,13,13) -> (16, N*5*5)
    z1_im = z1.reshape(8, N, oh1, ow1)
    p2, (_, oh2, ow2) = im2col_pool_phases(z1_im, 3, 3)  # (4, 72, N*25)
    z2 = conv_relu_pool(p2, w2.reshape(16, 8 * 3 * 3), b2)

    # tiny reorder to PyTorch NCHW flatten order: (16, N, 25) -> (N, 400)
    f = z2.reshape(16, N, oh2 * ow2).transpose(1, 0, 2).reshape(N, 16 * oh2 * ow2)

    # fc1 + ReLU + fc2 fused in one kernel
    return fc_fused(f, fw1, fb1, fw2, fb2)               # (N, 10)


# ----------------------------------------------------------------------------
# Pure-JAX reference (correctness check only)
# ----------------------------------------------------------------------------
def reference_forward(x, params):
    w1, b1, w2, b2, fw1, fb1, fw2, fb2 = params

    def conv(x, w, b):
        y = jax.lax.conv_general_dilated(
            x, w, window_strides=(1, 1), padding="VALID",
            dimension_numbers=("NCHW", "OIHW", "NCHW"))
        return y + b.reshape(1, -1, 1, 1)

    def pool(x):
        return jax.lax.reduce_window(
            x, -jnp.inf, jax.lax.max, (1, 1, 2, 2), (1, 1, 2, 2), "VALID")

    y = pool(jax.nn.relu(conv(x, w1, b1)))
    y = pool(jax.nn.relu(conv(y, w2, b2)))
    y = y.reshape(x.shape[0], 16 * 5 * 5)
    y = jax.nn.relu(y @ fw1.T + fb1)
    return y @ fw2.T + fb2


# ----------------------------------------------------------------------------
# Deterministic parameter init (shapes from SimpleCNN.__init__)
# ----------------------------------------------------------------------------
def init_params(key):
    ks = jax.random.split(key, 8)

    def uni(k, shape, fan_in):
        bound = 1.0 / jnp.sqrt(fan_in)
        return jax.random.uniform(k, shape, jnp.float32, -bound, bound)

    w1 = uni(ks[0], (8, 1, 3, 3), 1 * 3 * 3)
    b1 = uni(ks[1], (8,), 1 * 3 * 3)
    w2 = uni(ks[2], (16, 8, 3, 3), 8 * 3 * 3)
    b2 = uni(ks[3], (16,), 8 * 3 * 3)
    fw1 = uni(ks[4], (32, 16 * 5 * 5), 16 * 5 * 5)
    fb1 = uni(ks[5], (32,), 16 * 5 * 5)
    fw2 = uni(ks[6], (10, 32), 32)
    fb2 = uni(ks[7], (10,), 32)
    return (w1, b1, w2, b2, fw1, fb1, fw2, fb2)


if __name__ == "__main__":
    key = jax.random.PRNGKey(0)
    k_x, k_p = jax.random.split(key)

    # MNIST-style input implied by the 16*5*5 flatten: (N, 1, 28, 28), NCHW
    x = jax.random.normal(k_x, (2, 1, 28, 28), dtype=jnp.float32)
    params = init_params(k_p)

    fwd = jax.jit(simple_cnn_forward)
    out = jax.block_until_ready(fwd(x, params))
    assert out.shape == (2, 10), out.shape

    ref = jax.block_until_ready(jax.jit(reference_forward)(x, params))
    assert jnp.allclose(out, ref, atol=2e-3, rtol=2e-3), (
        float(jnp.max(jnp.abs(out - ref))))

    print("KERNEL_OK")
</pallas_src>

<mosaic_0001>
module attributes {stable_mosaic.version = 11 : i64} {
  func.func @_conv_relu_pool_kernel(%arg0: i32, %arg1: memref<4x9x338xf32, #tpu.memory_space<vmem>>, %arg2: memref<8x9xf32, #tpu.memory_space<vmem>>, %arg3: memref<8x1xf32, #tpu.memory_space<vmem>>, %arg4: memref<8x338xf32, #tpu.memory_space<vmem>>) attributes {dimension_semantics = [#tpu.dimension_semantics<arbitrary>], iteration_bounds = array<i64: 1>, scalar_prefetch = 0 : i64, scratch_operands = 0 : i64, tpu.core_type = #tpu.core_type<tc>, window_params = [{pipeline_mode = #tpu.pipeline_mode<synchronous>, transform_indices = @transform_0, window_bounds = array<i64: 4, 9, 338>}, {pipeline_mode = #tpu.pipeline_mode<synchronous>, transform_indices = @transform_1, window_bounds = array<i64: 8, 9>}, {pipeline_mode = #tpu.pipeline_mode<synchronous>, transform_indices = @transform_2, window_bounds = array<i64: 8, 1>}, {pipeline_mode = #tpu.pipeline_mode<synchronous>, transform_indices = @transform_3, window_bounds = array<i64: 8, 338>}]} {
    %c0 = arith.constant 0 : index
    %c0_0 = arith.constant 0 : index
    %0 = vector.load %arg2[%c0, %c0_0] : memref<8x9xf32, #tpu.memory_space<vmem>>, vector<8x9xf32>
    %c0_1 = arith.constant 0 : index
    %c0_2 = arith.constant 0 : index
    %c0_3 = arith.constant 0 : index
    %1 = vector.load %arg1[%c0_1, %c0_2, %c0_3] : memref<4x9x338xf32, #tpu.memory_space<vmem>>, vector<1x9x338xf32>
    %2 = vector.shape_cast %1 : vector<1x9x338xf32> to vector<9x338xf32>
    %cst = arith.constant dense<0.000000e+00> : vector<8x338xf32>
    %3 = tpu.matmul %0, %2, %cst {dimension_numbers = #tpu.dot_dimension_numbers<[1], [0], [0], [1], [0, 0, 1, 1], [], []>} : vector<8x9xf32>, vector<9x338xf32>, vector<8x338xf32> -> vector<8x338xf32>
    %c1 = arith.constant 1 : index
    %c0_4 = arith.constant 0 : index
    %c0_5 = arith.constant 0 : index
    %4 = vector.load %arg1[%c1, %c0_4, %c0_5] : memref<4x9x338xf32, #tpu.memory_space<vmem>>, vector<1x9x338xf32>
    %5 = vector.shape_cast %4 : vector<1x9x338xf32> to vector<9x338xf32>
    %cst_6 = arith.constant dense<0.000000e+00> : vector<8x338xf32>
    %6 = tpu.matmul %0, %5, %cst_6 {dimension_numbers = #tpu.dot_dimension_numbers<[1], [0], [0], [1], [0, 0, 1, 1], [], []>} : vector<8x9xf32>, vector<9x338xf32>, vector<8x338xf32> -> vector<8x338xf32>
    %7 = arith.maximumf %3, %6 : vector<8x338xf32>
    %c2 = arith.constant 2 : index
    %c0_7 = arith.constant 0 : index
    %c0_8 = arith.constant 0 : index
    %8 = vector.load %arg1[%c2, %c0_7, %c0_8] : memref<4x9x338xf32, #tpu.memory_space<vmem>>, vector<1x9x338xf32>
    %9 = vector.shape_cast %8 : vector<1x9x338xf32> to vector<9x338xf32>
    %cst_9 = arith.constant dense<0.000000e+00> : vector<8x338xf32>
    %10 = tpu.matmul %0, %9, %cst_9 {dimension_numbers = #tpu.dot_dimension_numbers<[1], [0], [0], [1], [0, 0, 1, 1], [], []>} : vector<8x9xf32>, vector<9x338xf32>, vector<8x338xf32> -> vector<8x338xf32>
    %11 = arith.maximumf %7, %10 : vector<8x338xf32>
    %c3 = arith.constant 3 : index
    %c0_10 = arith.constant 0 : index
    %c0_11 = arith.constant 0 : index
    %12 = vector.load %arg1[%c3, %c0_10, %c0_11] : memref<4x9x338xf32, #tpu.memory_space<vmem>>, vector<1x9x338xf32>
    %13 = vector.shape_cast %12 : vector<1x9x338xf32> to vector<9x338xf32>
    %cst_12 = arith.constant dense<0.000000e+00> : vector<8x338xf32>
    %14 = tpu.matmul %0, %13, %cst_12 {dimension_numbers = #tpu.dot_dimension_numbers<[1], [0], [0], [1], [0, 0, 1, 1], [], []>} : vector<8x9xf32>, vector<9x338xf32>, vector<8x338xf32> -> vector<8x338xf32>
    %15 = arith.maximumf %11, %14 : vector<8x338xf32>
    %c0_13 = arith.constant 0 : index
    %c0_14 = arith.constant 0 : index
    %16 = vector.load %arg3[%c0_13, %c0_14] : memref<8x1xf32, #tpu.memory_space<vmem>>, vector<8x1xf32>
    %17 = vector.broadcast %16 : vector<8x1xf32> to vector<8x338xf32>
    %18 = arith.addf %15, %17 : vector<8x338xf32>
    %cst_15 = arith.constant 0.000000e+00 : f32
    %19 = vector.broadcast %cst_15 : f32 to vector<8x338xf32>
    %20 = arith.maximumf %18, %19 : vector<8x338xf32>
    %c0_16 = arith.constant 0 : index
    %c0_17 = arith.constant 0 : index
    %21 = vector.load %arg4[%c0_16, %c0_17] : memref<8x338xf32, #tpu.memory_space<vmem>>, vector<8x338xf32>
    tpu.vector_store %arg4[%c0_16, %c0_17], %20 {strides = array<i32>} : memref<8x338xf32, #tpu.memory_space<vmem>>, vector<8x338xf32>,
    return
  }
  func.func @transform_0(%arg0: i32) -> (i32, i32, i32) {
    %c0_i32 = arith.constant 0 : i32
    %c0_i32_0 = arith.constant 0 : i32
    %c0_i32_1 = arith.constant 0 : i32
    %c0_i32_2 = arith.constant 0 : i32
    return %c0_i32, %c0_i32_0, %c0_i32_1 : i32, i32, i32
  }
  func.func @transform_1(%arg0: i32) -> (i32, i32) {
    %c0_i32 = arith.constant 0 : i32
    %c0_i32_0 = arith.constant 0 : i32
    %c0_i32_1 = arith.constant 0 : i32
    return %c0_i32, %c0_i32_0 : i32, i32
  }
  func.func @transform_2(%arg0: i32) -> (i32, i32) {
    %c0_i32 = arith.constant 0 : i32
    %c0_i32_0 = arith.constant 0 : i32
    %c0_i32_1 = arith.constant 0 : i32
    return %c0_i32, %c0_i32_0 : i32, i32
  }
  func.func @transform_3(%arg0: i32) -> (i32, i32) {
    %c0_i32 = arith.constant 0 : i32
    %c0_i32_0 = arith.constant 0 : i32
    %c0_i32_1 = arith.constant 0 : i32
    return %c0_i32, %c0_i32_0 : i32, i32
  }
}

module attributes {stable_mosaic.version = 11 : i64} {
  func.func @_conv_relu_pool_kernel(%arg0: i32, %arg1: memref<4x72x50xf32, #tpu.memory_space<vmem>>, %arg2: memref<16x72xf32, #tpu.memory_space<vmem>>, %arg3: memref<16x1xf32, #tpu.memory_space<vmem>>, %arg4: memref<16x50xf32, #tpu.memory_space<vmem>>) attributes {dimension_semantics = [#tpu.dimension_semantics<arbitrary>], iteration_bounds = array<i64: 1>, scalar_prefetch = 0 : i64, scratch_operands = 0 : i64, tpu.core_type = #tpu.core_type<tc>, window_params = [{pipeline_mode = #tpu.pipeline_mode<synchronous>, transform_indices = @transform_0, window_bounds = array<i64: 4, 72, 50>}, {pipeline_mode = #tpu.pipeline_mode<synchronous>, transform_indices = @transform_1, window_bounds = array<i64: 16, 72>}, {pipeline_mode = #tpu.pipeline_mode<synchronous>, transform_indices = @transform_2, window_bounds = array<i64: 16, 1>}, {pipeline_mode = #tpu.pipeline_mode<synchronous>, transform_indices = @transform_3, window_bounds = array<i64: 16, 50>}]} {
    %c0 = arith.constant 0 : index
    %c0_0 = arith.constant 0 : index
    %0 = vector.load %arg2[%c0, %c0_0] : memref<16x72xf32, #tpu.memory_space<vmem>>, vector<16x72xf32>
    %c0_1 = arith.constant 0 : index
    %c0_2 = arith.constant 0 : index
    %c0_3 = arith.constant 0 : index
    %1 = vector.load %arg1[%c0_1, %c0_2, %c0_3] : memref<4x72x50xf32, #tpu.memory_space<vmem>>, vector<1x72x50xf32>
    %2 = vector.shape_cast %1 : vector<1x72x50xf32> to vector<72x50xf32>
    %cst = arith.constant dense<0.000000e+00> : vector<16x50xf32>
    %3 = tpu.matmul %0, %2, %cst {dimension_numbers = #tpu.dot_dimension_numbers<[1], [0], [0], [1], [0, 0, 1, 1], [], []>} : vector<16x72xf32>, vector<72x50xf32>, vector<16x50xf32> -> vector<16x50xf32>
    %c1 = arith.constant 1 : index
    %c0_4 = arith.constant 0 : index
    %c0_5 = arith.constant 0 : index
    %4 = vector.load %arg1[%c1, %c0_4, %c0_5] : memref<4x72x50xf32, #tpu.memory_space<vmem>>, vector<1x72x50xf32>
    %5 = vector.shape_cast %4 : vector<1x72x50xf32> to vector<72x50xf32>
    %cst_6 = arith.constant dense<0.000000e+00> : vector<16x50xf32>
    %6 = tpu.matmul %0, %5, %cst_6 {dimension_numbers = #tpu.dot_dimension_numbers<[1], [0], [0], [1], [0, 0, 1, 1], [], []>} : vector<16x72xf32>, vector<72x50xf32>, vector<16x50xf32> -> vector<16x50xf32>
    %7 = arith.maximumf %3, %6 : vector<16x50xf32>
    %c2 = arith.constant 2 : index
    %c0_7 = arith.constant 0 : index
    %c0_8 = arith.constant 0 : index
    %8 = vector.load %arg1[%c2, %c0_7, %c0_8] : memref<4x72x50xf32, #tpu.memory_space<vmem>>, vector<1x72x50xf32>
    %9 = vector.shape_cast %8 : vector<1x72x50xf32> to vector<72x50xf32>
    %cst_9 = arith.constant dense<0.000000e+00> : vector<16x50xf32>
    %10 = tpu.matmul %0, %9, %cst_9 {dimension_numbers = #tpu.dot_dimension_numbers<[1], [0], [0], [1], [0, 0, 1, 1], [], []>} : vector<16x72xf32>, vector<72x50xf32>, vector<16x50xf32> -> vector<16x50xf32>
    %11 = arith.maximumf %7, %10 : vector<16x50xf32>
    %c3 = arith.constant 3 : index
    %c0_10 = arith.constant 0 : index
    %c0_11 = arith.constant 0 : index
    %12 = vector.load %arg1[%c3, %c0_10, %c0_11] : memref<4x72x50xf32, #tpu.memory_space<vmem>>, vector<1x72x50xf32>
    %13 = vector.shape_cast %12 : vector<1x72x50xf32> to vector<72x50xf32>
    %cst_12 = arith.constant dense<0.000000e+00> : vector<16x50xf32>
    %14 = tpu.matmul %0, %13, %cst_12 {dimension_numbers = #tpu.dot_dimension_numbers<[1], [0], [0], [1], [0, 0, 1, 1], [], []>} : vector<16x72xf32>, vector<72x50xf32>, vector<16x50xf32> -> vector<16x50xf32>
    %15 = arith.maximumf %11, %14 : vector<16x50xf32>
    %c0_13 = arith.constant 0 : index
    %c0_14 = arith.constant 0 : index
    %16 = vector.load %arg3[%c0_13, %c0_14] : memref<16x1xf32, #tpu.memory_space<vmem>>, vector<16x1xf32>
    %17 = vector.broadcast %16 : vector<16x1xf32> to vector<16x50xf32>
    %18 = arith.addf %15, %17 : vector<16x50xf32>
    %cst_15 = arith.constant 0.000000e+00 : f32
    %19 = vector.broadcast %cst_15 : f32 to vector<16x50xf32>
    %20 = arith.maximumf %18, %19 : vector<16x50xf32>
    %c0_16 = arith.constant 0 : index
    %c0_17 = arith.constant 0 : index
    %21 = vector.load %arg4[%c0_16, %c0_17] : memref<16x50xf32, #tpu.memory_space<vmem>>, vector<16x50xf32>
    tpu.vector_store %arg4[%c0_16, %c0_17], %20 {strides = array<i32>} : memref<16x50xf32, #tpu.memory_space<vmem>>, vector<16x50xf32>,
    return
  }
  func.func @transform_0(%arg0: i32) -> (i32, i32, i32) {
    %c0_i32 = arith.constant 0 : i32
    %c0_i32_0 = arith.constant 0 : i32
    %c0_i32_1 = arith.constant 0 : i32
    %c0_i32_2 = arith.constant 0 : i32
    return %c0_i32, %c0_i32_0, %c0_i32_1 : i32, i32, i32
  }
  func.func @transform_1(%arg0: i32) -> (i32, i32) {
    %c0_i32 = arith.constant 0 : i32
    %c0_i32_0 = arith.constant 0 : i32
    %c0_i32_1 = arith.constant 0 : i32
    return %c0_i32, %c0_i32_0 : i32, i32
  }
  func.func @transform_2(%arg0: i32) -> (i32, i32) {
    %c0_i32 = arith.constant 0 : i32
    %c0_i32_0 = arith.constant 0 : i32
    %c0_i32_1 = arith.constant 0 : i32
    return %c0_i32, %c0_i32_0 : i32, i32
  }
  func.func @transform_3(%arg0: i32) -> (i32, i32) {
    %c0_i32 = arith.constant 0 : i32
    %c0_i32_0 = arith.constant 0 : i32
    %c0_i32_1 = arith.constant 0 : i32
    return %c0_i32, %c0_i32_0 : i32, i32
  }
}

module attributes {stable_mosaic.version = 11 : i64} {
  func.func @_fc_fused_kernel(%arg0: i32, %arg1: memref<2x400xf32, #tpu.memory_space<vmem>>, %arg2: memref<400x32xf32, #tpu.memory_space<vmem>>, %arg3: memref<1x32xf32, #tpu.memory_space<vmem>>, %arg4: memref<32x10xf32, #tpu.memory_space<vmem>>, %arg5: memref<1x10xf32, #tpu.memory_space<vmem>>, %arg6: memref<2x10xf32, #tpu.memory_space<vmem>>) attributes {dimension_semantics = [#tpu.dimension_semantics<arbitrary>], iteration_bounds = array<i64: 1>, scalar_prefetch = 0 : i64, scratch_operands = 0 : i64, tpu.core_type = #tpu.core_type<tc>, window_params = [{pipeline_mode = #tpu.pipeline_mode<synchronous>, transform_indices = @transform_0, window_bounds = array<i64: 2, 400>}, {pipeline_mode = #tpu.pipeline_mode<synchronous>, transform_indices = @transform_1, window_bounds = array<i64: 400, 32>}, {pipeline_mode = #tpu.pipeline_mode<synchronous>, transform_indices = @transform_2, window_bounds = array<i64: 1, 32>}, {pipeline_mode = #tpu.pipeline_mode<synchronous>, transform_indices = @transform_3, window_bounds = array<i64: 32, 10>}, {pipeline_mode = #tpu.pipeline_mode<synchronous>, transform_indices = @transform_4, window_bounds = array<i64: 1, 10>}, {pipeline_mode = #tpu.pipeline_mode<synchronous>, transform_indices = @transform_5, window_bounds = array<i64: 2, 10>}]} {
    %c0 = arith.constant 0 : index
    %c0_0 = arith.constant 0 : index
    %0 = vector.load %arg1[%c0, %c0_0] : memref<2x400xf32, #tpu.memory_space<vmem>>, vector<2x400xf32>
    %c0_1 = arith.constant 0 : index
    %c0_2 = arith.constant 0 : index
    %1 = vector.load %arg2[%c0_1, %c0_2] : memref<400x32xf32, #tpu.memory_space<vmem>>, vector<400x32xf32>
    %cst = arith.constant dense<0.000000e+00> : vector<2x32xf32>
    %2 = tpu.matmul %0, %1, %cst {dimension_numbers = #tpu.dot_dimension_numbers<[1], [0], [0], [1], [0, 0, 1, 1], [], []>} : vector<2x400xf32>, vector<400x32xf32>, vector<2x32xf32> -> vector<2x32xf32>
    %c0_3 = arith.constant 0 : index
    %c0_4 = arith.constant 0 : index
    %3 = vector.load %arg3[%c0_3, %c0_4] : memref<1x32xf32, #tpu.memory_space<vmem>>, vector<1x32xf32>
    %4 = vector.broadcast %3 : vector<1x32xf32> to vector<2x32xf32>
    %5 = arith.addf %2, %4 : vector<2x32xf32>
    %cst_5 = arith.constant 0.000000e+00 : f32
    %6 = vector.broadcast %cst_5 : f32 to vector<2x32xf32>
    %7 = arith.maximumf %5, %6 : vector<2x32xf32>
    %c0_6 = arith.constant 0 : index
    %c0_7 = arith.constant 0 : index
    %8 = vector.load %arg4[%c0_6, %c0_7] : memref<32x10xf32, #tpu.memory_space<vmem>>, vector<32x10xf32>
    %cst_8 = arith.constant dense<0.000000e+00> : vector<2x10xf32>
    %9 = tpu.matmul %7, %8, %cst_8 {dimension_numbers = #tpu.dot_dimension_numbers<[1], [0], [0], [1], [0, 0, 1, 1], [], []>} : vector<2x32xf32>, vector<32x10xf32>, vector<2x10xf32> -> vector<2x10xf32>
    %c0_9 = arith.constant 0 : index
    %c0_10 = arith.constant 0 : index
    %10 = vector.load %arg5[%c0_9, %c0_10] : memref<1x10xf32, #tpu.memory_space<vmem>>, vector<1x10xf32>
    %11 = vector.broadcast %10 : vector<1x10xf32> to vector<2x10xf32>
    %12 = arith.addf %9, %11 : vector<2x10xf32>
    %c0_11 = arith.constant 0 : index
    %c0_12 = arith.constant 0 : index
    %13 = vector.load %arg6[%c0_11, %c0_12] : memref<2x10xf32, #tpu.memory_space<vmem>>, vector<2x10xf32>
    tpu.vector_store %arg6[%c0_11, %c0_12], %12 {strides = array<i32>} : memref<2x10xf32, #tpu.memory_space<vmem>>, vector<2x10xf32>,
    return
  }
  func.func @transform_0(%arg0: i32) -> (i32, i32) {
    %c0_i32 = arith.constant 0 : i32
    %c0_i32_0 = arith.constant 0 : i32
    %c0_i32_1 = arith.constant 0 : i32
    return %c0_i32, %c0_i32_0 : i32, i32
  }
  func.func @transform_1(%arg0: i32) -> (i32, i32) {
    %c0_i32 = arith.constant 0 : i32
    %c0_i32_0 = arith.constant 0 : i32
    %c0_i32_1 = arith.constant 0 : i32
    return %c0_i32, %c0_i32_0 : i32, i32
  }
  func.func @transform_2(%arg0: i32) -> (i32, i32) {
    %c0_i32 = arith.constant 0 : i32
    %c0_i32_0 = arith.constant 0 : i32
    %c0_i32_1 = arith.constant 0 : i32
    return %c0_i32, %c0_i32_0 : i32, i32
  }
  func.func @transform_3(%arg0: i32) -> (i32, i32) {
    %c0_i32 = arith.constant 0 : i32
    %c0_i32_0 = arith.constant 0 : i32
    %c0_i32_1 = arith.constant 0 : i32
    return %c0_i32, %c0_i32_0 : i32, i32
  }
  func.func @transform_4(%arg0: i32) -> (i32, i32) {
    %c0_i32 = arith.constant 0 : i32
    %c0_i32_0 = arith.constant 0 : i32
    %c0_i32_1 = arith.constant 0 : i32
    return %c0_i32, %c0_i32_0 : i32, i32
  }
  func.func @transform_5(%arg0: i32) -> (i32, i32) {
    %c0_i32 = arith.constant 0 : i32
    %c0_i32_0 = arith.constant 0 : i32
    %c0_i32_1 = arith.constant 0 : i32
    return %c0_i32, %c0_i32_0 : i32, i32
  }
}

</mosaic_0001>

<llo_original>
// kernel: squeeze.328
$region0: #{squeeze.328}
  %s0 = inlined_call_operand.vmem [shape: f32[2,13,13], index: 0, kind: input, shape index: {}]
  %s1 = inlined_call_operand.vmem [shape: f32[1,338], index: 1, kind: output, shape index: {}]
  $region1: #{squeeze.328} parent=0
    #allocation0 [shape = 'u8[12288]{0}', space=vmem, size = 0x3000, scoped, tag = 'scoped mem for output reshape']
    %v2 = vld [vmem:[%s0] sm:$0x1]
    %vm3 = vcmask 105472
    %4 = vst.msk [vmem:[#allocation0] sm:$0x1] %vm3, %v2
    %s5 = scalar_lea.vmem %s0, 22
    %v6 = vld [vmem:[%s5] sm:$0x1]
    %s7 = scalar_lea.vmem %s0, 22
    %v8 = vld [vmem:[%s7] sm:$0x1]
    %vm9 = vcmask 72704
    %v10 = vsel %vm9, %v8, %v6
    %11 = vrot.lane.b32.xlu0 %v10, 119
    %v12 = vpop.permute.xlu0 %11
    %vm13 = vcmask 31744
    %s14 = scalar_lea.vmem [#allocation0], 16
    %15 = vst.msk [vmem:[%s14] sm:$0x1] %vm13, %v12
    %vm16 = vcmask 1048504
    %s17 = scalar_lea.vmem [#allocation0], 8
    %18 = vst.msk [vmem:[%s17] sm:$0x1] %vm16, %v12
    %s19 = scalar_lea.vmem %s0, 9
    %v20 = vld [vmem:[%s19] sm:$0x1]
    %s21 = scalar_lea.vmem %s0, 9
    %v22 = vld [vmem:[%s21] sm:$0x1]
    %vm23 = vcmask 89088
    %v24 = vsel %vm23, %v22, %v20
    %25 = vrot.lane.b32.xlu0 %v24, 117
    %v26 = vpop.permute.xlu0 %25
    %vm27 = vcmask 15360
    %s28 = scalar_lea.vmem [#allocation0], 8
    %29 = vst.msk [vmem:[%s28] sm:$0x1] %vm27, %v26
    %vm30 = vcmask 1048488
    %31 = vst.msk [vmem:[#allocation0] sm:$0x1] %vm30, %v26
    %s32 = scalar_lea.vmem %s0, 21
    %v33 = vld [vmem:[%s32] sm:$0x1]
    %34 = vrot.lane.b32.xlu0 %v33, 106
    %v35 = vpop.permute.xlu0 %34
    %vm36 = vcmask 974672
    %s37 = scalar_lea.vmem [#allocation0], 8
    %38 = vst.msk [vmem:[%s37] sm:$0x1] %vm36, %v35
    %s39 = scalar_lea.vmem %s0, 8
    %v40 = vld [vmem:[%s39] sm:$0x1]
    %41 = vrot.lane.b32.xlu0 %v40, 104
    %v42 = vpop.permute.xlu0 %41
    %vm43 = vcmask 958272
    %44 = vst.msk [vmem:[#allocation0] sm:$0x1] %vm43, %v42
    %s45 = scalar_lea.vmem %s0, 20
    %v46 = vld [vmem:[%s45] sm:$0x1]
    %47 = vrot.lane.b32.xlu0 %v46, 93
    %v48 = vpop.permute.xlu0 %47
    %vm49 = vcmask 868072
    %s50 = scalar_lea.vmem [#allocation0], 8
    %51 = vst.msk [vmem:[%s50] sm:$0x1] %vm49, %v48
    %s52 = scalar_lea.vmem %s0, 7
    %v53 = vld [vmem:[%s52] sm:$0x1]
    %54 = vrot.lane.b32.xlu0 %v53, 91
    %v55 = vpop.permute.xlu0 %54
    %vm56 = vcmask 851672
    %57 = vst.msk [vmem:[#allocation0] sm:$0x1] %vm56, %v55
    %s58 = scalar_lea.vmem %s0, 19
    %v59 = vld [vmem:[%s58] sm:$0x1]
    %60 = vrot.lane.b32.xlu0 %v59, 80
    %v61 = vpop.permute.xlu0 %60
    %vm62 = vcmask 761472
    %s63 = scalar_lea.vmem [#allocation0], 8
    %64 = vst.msk [vmem:[%s63] sm:$0x1] %vm62, %v61
    %s65 = scalar_lea.vmem %s0, 6
    %v66 = vld [vmem:[%s65] sm:$0x1]
    %67 = vrot.lane.b32.xlu0 %v66, 78
    %v68 = vpop.permute.xlu0 %67
    %vm69 = vcmask 745072
    %70 = vst.msk [vmem:[#allocation0] sm:$0x1] %vm69, %v68
    %s71 = scalar_lea.vmem %s0, 28
    %v72 = vld [vmem:[%s71] sm:$0x1]
    %73 = vrot.lane.b32.xlu0 %v72, 69
    %v74 = vpop.permute.xlu0 %73
    %vm75 = vcmask 671272
    %s76 = scalar_lea.vmem [#allocation0], 16
    %77 = vst.msk [vmem:[%s76] sm:$0x1] %vm75, %v74
    %s78 = scalar_lea.vmem %s0, 18
    %v79 = vld [vmem:[%s78] sm:$0x1]
    %80 = vrot.lane.b32.xlu0 %v79, 67
    %v81 = vpop.permute.xlu0 %80
    %vm82 = vcmask 654872
    %s83 = scalar_lea.vmem [#allocation0], 8
    %84 = vst.msk [vmem:[%s83] sm:$0x1] %vm82, %v81
    %s85 = scalar_lea.vmem %s0, 5
    %v86 = vld [vmem:[%s85] sm:$0x1]
    %87 = vrot.lane.b32.xlu0 %v86, 65
    %v88 = vpop.permute.xlu0 %87
    %vm89 = vcmask 638472
    %90 = vst.msk [vmem:[#allocation0] sm:$0x1] %vm89, %v88
    %s91 = scalar_lea.vmem %s0, 27
    %v92 = vld [vmem:[%s91] sm:$0x1]
    %93 = vrot.lane.b32.xlu0 %v92, 56
    %v94 = vpop.permute.xlu0 %93
    %vm95 = vcmask 564672
    %s96 = scalar_lea.vmem [#allocation0], 16
    %97 = vst.msk [vmem:[%s96] sm:$0x1] %vm95, %v94
    %s98 = scalar_lea.vmem %s0, 17
    %v99 = vld [vmem:[%s98] sm:$0x1]
    %100 = vrot.lane.b32.xlu0 %v99, 54
    %v101 = vpop.permute.xlu0 %100
    %vm102 = vcmask 548272
    %s103 = scalar_lea.vmem [#allocation0], 8
    %104 = vst.msk [vmem:[%s103] sm:$0x1] %vm102, %v101
    %s105 = scalar_lea.vmem %s0, 4
    %v106 = vld [vmem:[%s105] sm:$0x1]
    %107 = vrot.lane.b32.xlu0 %v106, 52
    %v108 = vpop.permute.xlu0 %107
    %vm109 = vcmask 531872
    %110 = vst.msk [vmem:[#allocation0] sm:$0x1] %vm109, %v108
    %s111 = scalar_lea.vmem %s0, 26
    %v112 = vld [vmem:[%s111] sm:$0x1]
    %113 = vrot.lane.b32.xlu0 %v112, 43
    %v114 = vpop.permute.xlu0 %113
    %vm115 = vcmask 458072
    %s116 = scalar_lea.vmem [#allocation0], 16
    %117 = vst.msk [vmem:[%s116] sm:$0x1] %vm115, %v114
    %s118 = scalar_lea.vmem %s0, 16
    %v119 = vld [vmem:[%s118] sm:$0x1]
    %120 = vrot.lane.b32.xlu0 %v119, 41
    %v121 = vpop.permute.xlu0 %120
    %vm122 = vcmask 441672
    %s123 = scalar_lea.vmem [#allocation0], 8
    %124 = vst.msk [vmem:[%s123] sm:$0x1] %vm122, %v121
    %s125 = scalar_lea.vmem %s0, 3
    %v126 = vld [vmem:[%s125] sm:$0x1]
    %127 = vrot.lane.b32.xlu0 %v126, 39
    %v128 = vpop.permute.xlu0 %127
    %vm129 = vcmask 425272
    %130 = vst.msk [vmem:[#allocation0] sm:$0x1] %vm129, %v128
    %s131 = scalar_lea.vmem %s0, 25
    %v132 = vld [vmem:[%s131] sm:$0x1]
    %133 = vrot.lane.b32.xlu0 %v132, 30
    %v134 = vpop.permute.xlu0 %133
    %vm135 = vcmask 351472
    %s136 = scalar_lea.vmem [#allocation0], 16
    %137 = vst.msk [vmem:[%s136] sm:$0x1] %vm135, %v134
    %s138 = scalar_lea.vmem %s0, 12
    %v139 = vld [vmem:[%s138] sm:$0x1]
    %140 = vrot.lane.b32.xlu0 %v139, 28
    %v141 = vpop.permute.xlu0 %140
    %vm142 = vcmask 335072
    %s143 = scalar_lea.vmem [#allocation0], 8
    %144 = vst.msk [vmem:[%s143] sm:$0x1] %vm142, %v141
    %s145 = scalar_lea.vmem %s0, 2
    %v146 = vld [vmem:[%s145] sm:$0x1]
    %147 = vrot.lane.b32.xlu0 %v146, 26
    %v148 = vpop.permute.xlu0 %147
    %vm149 = vcmask 318672
    %150 = vst.msk [vmem:[#allocation0] sm:$0x1] %vm149, %v148
    %s151 = scalar_lea.vmem %s0, 24
    %v152 = vld [vmem:[%s151] sm:$0x1]
    %153 = vrot.lane.b32.xlu0 %v152, 17
    %v154 = vpop.permute.xlu0 %153
    %vm155 = vcmask 244872
    %s156 = scalar_lea.vmem [#allocation0], 16
    %157 = vst.msk [vmem:[%s156] sm:$0x1] %vm155, %v154
    %s158 = scalar_lea.vmem %s0, 11
    %v159 = vld [vmem:[%s158] sm:$0x1]
    %160 = vrot.lane.b32.xlu0 %v159, 15
    %v161 = vpop.permute.xlu0 %160
    %vm162 = vcmask 228472
    %s163 = scalar_lea.vmem [#allocation0], 8
    %164 = vst.msk [vmem:[%s163] sm:$0x1] %vm162, %v161
    %s165 = scalar_lea.vmem %s0, 1
    %v166 = vld [vmem:[%s165] sm:$0x1]
    %167 = vrot.lane.b32.xlu0 %v166, 13
    %v168 = vpop.permute.xlu0 %167
    %vm169 = vcmask 212072
    %170 = vst.msk [vmem:[#allocation0] sm:$0x1] %vm169, %v168
    %s171 = scalar_lea.vmem %s0, 23
    %v172 = vld [vmem:[%s171] sm:$0x1]
    %173 = vrot.lane.b32.xlu0 %v172, 4
    %v174 = vpop.permute.xlu0 %173
    %vm175 = vcmask 138272
    %s176 = scalar_lea.vmem [#allocation0], 16
    %177 = vst.msk [vmem:[%s176] sm:$0x1] %vm175, %v174
    %s178 = scalar_lea.vmem %s0, 10
    %v179 = vld [vmem:[%s178] sm:$0x1]
    %180 = vrot.lane.b32.xlu0 %v179, 2
    %v181 = vpop.permute.xlu0 %180
    %vm182 = vcmask 121872
    %s183 = scalar_lea.vmem [#allocation0], 8
    %184 = vst.msk [vmem:[%s183] sm:$0x1] %vm182, %v181
    %s186 = ssub.s32 2, 1
    %v187 = vld [vmem:[#allocation0] sm:%s186]
    %s189 = ssub.s32 2, 1
    %190 = vst [vmem:[%s1] sm:%s189] %v187
    %s191 = scalar_lea.vmem [#allocation0], 8
    %v192 = vld [vmem:[%s191] sm:%s186]
    %s194 = ssub.s32 2, 1
    %s195 = scalar_lea.vmem %s1, 1
    %196 = vst [vmem:[%s195] sm:%s194] %v192
    %s197 = scalar_lea.vmem [#allocation0], 16
    %v198 = vld [vmem:[%s197] sm:%s186]
    %s200 = ssub.s32 2, 1
    %s201 = scalar_lea.vmem %s1, 2
    %202 = vst [vmem:[%s201] sm:%s200] %v198

// kernel: squeeze.360
$region0: #{squeeze.360}
  %s0 = inlined_call_operand.vmem [shape: f32[1,2,5,5], index: 0, kind: input, shape index: {}]
  %s1 = inlined_call_operand.vmem [shape: f32[1,50], index: 1, kind: output, shape index: {}]
  $region1: #{squeeze.360} parent=0
    #allocation0 [shape = 'u8[4096]{0}', space=vmem, size = 0x1000, scoped, tag = 'scoped mem for output reshape']
    %v2 = vld [vmem:[%s0] sm:$0x1]
    %vm3 = vcmask 39936
    %4 = vst.msk [vmem:[#allocation0] sm:$0x1] %vm3, %v2
    %s5 = scalar_lea.vmem %s0, 12
    %v6 = vld [vmem:[%s5] sm:$0x1]
    %7 = vrot.lane.b32.xlu0 %v6, 45
    %v8 = vpop.permute.xlu0 %7
    %vm9 = vcmask 408936
    %10 = vst.msk [vmem:[#allocation0] sm:$0x1] %vm9, %v8
    %s11 = scalar_lea.vmem %s0, 11
    %v12 = vld [vmem:[%s11] sm:$0x1]
    %13 = vrot.lane.b32.xlu0 %v12, 40
    %v14 = vpop.permute.xlu0 %13
    %vm15 = vcmask 367936
    %16 = vst.msk [vmem:[#allocation0] sm:$0x1] %vm15, %v14
    %s17 = scalar_lea.vmem %s0, 10
    %v18 = vld [vmem:[%s17] sm:$0x1]
    %19 = vrot.lane.b32.xlu0 %v18, 35
    %v20 = vpop.permute.xlu0 %19
    %vm21 = vcmask 326936
    %22 = vst.msk [vmem:[#allocation0] sm:$0x1] %vm21, %v20
    %s23 = scalar_lea.vmem %s0, 9
    %v24 = vld [vmem:[%s23] sm:$0x1]
    %25 = vrot.lane.b32.xlu0 %v24, 30
    %v26 = vpop.permute.xlu0 %25
    %vm27 = vcmask 285936
    %28 = vst.msk [vmem:[#allocation0] sm:$0x1] %vm27, %v26
    %s29 = scalar_lea.vmem %s0, 8
    %v30 = vld [vmem:[%s29] sm:$0x1]
    %31 = vrot.lane.b32.xlu0 %v30, 25
    %v32 = vpop.permute.xlu0 %31
    %vm33 = vcmask 244936
    %34 = vst.msk [vmem:[#allocation0] sm:$0x1] %vm33, %v32
    %s35 = scalar_lea.vmem %s0, 4
    %v36 = vld [vmem:[%s35] sm:$0x1]
    %37 = vrot.lane.b32.xlu0 %v36, 20
    %v38 = vpop.permute.xlu0 %37
    %vm39 = vcmask 203936
    %40 = vst.msk [vmem:[#allocation0] sm:$0x1] %vm39, %v38
    %s41 = scalar_lea.vmem %s0, 3
    %v42 = vld [vmem:[%s41] sm:$0x1]
    %43 = vrot.lane.b32.xlu0 %v42, 15
    %v44 = vpop.permute.xlu0 %43
    %vm45 = vcmask 162936
    %46 = vst.msk [vmem:[#allocation0] sm:$0x1] %vm45, %v44
    %s47 = scalar_lea.vmem %s0, 2
    %v48 = vld [vmem:[%s47] sm:$0x1]
    %49 = vrot.lane.b32.xlu0 %v48, 10
    %v50 = vpop.permute.xlu0 %49
    %vm51 = vcmask 121936
    %52 = vst.msk [vmem:[#allocation0] sm:$0x1] %vm51, %v50
    %s53 = scalar_lea.vmem %s0, 1
    %v54 = vld [vmem:[%s53] sm:$0x1]
    %55 = vrot.lane.b32.xlu0 %v54, 5
    %v56 = vpop.permute.xlu0 %55
    %vm57 = vcmask 80936
    %58 = vst.msk [vmem:[#allocation0] sm:$0x1] %vm57, %v56
    %s60 = ssub.s32 2, 1
    %v61 = vld [vmem:[#allocation0] sm:%s60]
    %s63 = ssub.s32 2, 1
    %64 = vst [vmem:[%s1] sm:%s63] %v61

// kernel: simple_cnn_forward.3
$region0: #{simple_cnn_forward.3}
  #allocation0 [shape = 'u32[]', space=smem, size = 0x4, offset = 0x4, fixed_abs, tag = 'smem constant byte address 0x4 - core index']
  #allocation1 [shape = 'u32[72,128]{1,0:T(1,128)}', space=vmem, size = 0x9000, scoped, tag = 'internal scratch']
  %s0 = inlined_call_operand.vmem [shape: f32[4,9,338], index: 0, kind: input, shape index: {}]
  %s1 = inlined_call_operand.vmem [shape: f32[8,9], index: 1, kind: input, shape index: {}]
  %s2 = inlined_call_operand.vmem [shape: f32[8,1], index: 2, kind: input, shape index: {}]
  %s3 = inlined_call_operand.vmem [shape: f32[8,338], index: 3, kind: output, shape index: {}]
  %s4 = sld [smem:[#allocation0]]
  $region22: #{simple_cnn_forward.3} parent=0
    _
  %s6 = ssub.s32 1, %s4
  %s7 = scalar_select 0, %s6, %s4
  // Predicated region
  $region2: #{simple_cnn_forward.3} parent=0 // pred_check
    _
  $region3: #{simple_cnn_forward.3} parent=0 // pred_check_branch
    %9 = sbr.rel (0) target = $region5
  $region4: #{simple_cnn_forward.3} parent=0 // pred_region
    _
  $region5: #{simple_cnn_forward.3} parent=0 // pred_fallthru
    _
  // Predicated region
  $region6: #{simple_cnn_forward.3} parent=0 // pred_check
    _
  $region7: #{simple_cnn_forward.3} parent=0 // pred_check_branch
    %11 = sbr.rel (0) target = $region9
  $region8: #{simple_cnn_forward.3} parent=0 // pred_region
    _
  $region9: #{simple_cnn_forward.3} parent=0 // pred_fallthru
    _
  // Predicated region
  $region10: #{simple_cnn_forward.3} parent=0 // pred_check
    _
  $region11: #{simple_cnn_forward.3} parent=0 // pred_check_branch
    %13 = sbr.rel (0) target = $region13
  $region12: #{simple_cnn_forward.3} parent=0 // pred_region
    _
  $region13: #{simple_cnn_forward.3} parent=0 // pred_fallthru
    _
  %v14 = vld [vmem:[%s1] sm:$0xff]
  %v15 = vld [vmem:[%s0] sm:$0xff]
  %v16 = vld [vmem:[%s0 + $0x8] sm:$0xff]
  %v17 = vld [vmem:[%s0 + $0x10] sm:$0xff]
  %v18 = vld [vmem:[%s0 + $0x18] sm:$0x1]
  %v19 = vld [vmem:[%s0 + $0x20] sm:$0x1]
  %v20 = vld [vmem:[%s0 + $0x28] sm:$0x1]
  %vm21 = vcmask 72704
  %v23 = vsel %vm21, %v14, 0
  %vm25 = vcmask 1040384
  %v27 = vsel %vm25, %v18, 0
  %v30 = vsel %vm25, %v19, 0
  %v33 = vsel %vm25, %v20, 0
  %35 = vmatpush.msra.mxu0 0.0
  %36 = vmatpush.msra.mxu0 0.0
  %37 = vmatpush.msra.mxu0 0.0
  %38 = vmatpush.msra.mxu0 0.0
  %39 = vmatpush.msra.mxu0 0.0
  %40 = vmatpush.msra.mxu0 0.0
  %41 = vmatpush.msra.mxu0 0.0
  %42 = vmatpush.msra.mxu0 0.0
  %43 = vmatpush.msra.mxu0 0.0
  %44 = vmatpush.msra.mxu0 0.0
  %45 = vmatpush.msra.mxu0 0.0
  %46 = vmatpush.msra.mxu0 0.0
  %47 = vmatpush.msra.mxu0 0.0
  %48 = vmatpush.msra.mxu0 0.0
  %49 = vmatpush.msra.mxu0 %v27
  %50 = vmatpush.msra.mxu0 %v15
  %51 = vmatmul.f32.gmra.mxu0 %v23
  %v52 = vpop.f32.mrf.mxu0
  %v53 = vadd.f32 0.0, %v52
  %54 = vdwg.mxu0
  %55 = vmatpush.msra.mxu0 0.0
  %56 = vmatpush.msra.mxu0 0.0
  %57 = vmatpush.msra.mxu0 0.0
  %58 = vmatpush.msra.mxu0 0.0
  %59 = vmatpush.msra.mxu0 0.0
  %60 = vmatpush.msra.mxu0 0.0
  %61 = vmatpush.msra.mxu0 0.0
  %62 = vmatpush.msra.mxu0 0.0
  %63 = vmatpush.msra.mxu0 0.0
  %64 = vmatpush.msra.mxu0 0.0
  %65 = vmatpush.msra.mxu0 0.0
  %66 = vmatpush.msra.mxu0 0.0
  %67 = vmatpush.msra.mxu0 0.0
  %68 = vmatpush.msra.mxu0 0.0
  %69 = vmatpush.msra.mxu0 %v30
  %70 = vmatpush.msra.mxu0 %v16
  %71 = vmatmul.f32.gmra.mxu0 %v23
  %v72 = vpop.f32.mrf.mxu0
  %v73 = vadd.f32 0.0, %v72
  %74 = vdwg.mxu0
  %75 = vmatpush.msra.mxu0 0.0
  %76 = vmatpush.msra.mxu0 0.0
  %77 = vmatpush.msra.mxu0 0.0
  %78 = vmatpush.msra.mxu0 0.0
  %79 = vmatpush.msra.mxu0 0.0
  %80 = vmatpush.msra.mxu0 0.0
  %81 = vmatpush.msra.mxu0 0.0
  %82 = vmatpush.msra.mxu0 0.0
  %83 = vmatpush.msra.mxu0 0.0
  %84 = vmatpush.msra.mxu0 0.0
  %85 = vmatpush.msra.mxu0 0.0
  %86 = vmatpush.msra.mxu0 0.0
  %87 = vmatpush.msra.mxu0 0.0
  %88 = vmatpush.msra.mxu0 0.0
  %89 = vmatpush.msra.mxu0 %v33
  %90 = vmatpush.msra.mxu0 %v17
  %91 = vmatmul.f32.gmra.mxu0 %v23
  %v92 = vpop.f32.mrf.mxu0
  %v93 = vadd.f32 0.0, %v92
  %94 = vdwg.mxu0
  %s95 = scalar_lea.vmem %s0, 48
  %v96 = vld [vmem:[%s95] sm:$0xff]
  %v97 = vld [vmem:[%s95 + $0x8] sm:$0xff]
  %v98 = vld [vmem:[%s95 + $0x10] sm:$0xff]
  %v99 = vld [vmem:[%s95 + $0x18] sm:$0x1]
  %v100 = vld [vmem:[%s95 + $0x20] sm:$0x1]
  %v101 = vld [vmem:[%s95 + $0x28] sm:$0x1]
  %v103 = vsel %vm25, %v99, 0
  %v106 = vsel %vm25, %v100, 0
  %v109 = vsel %vm25, %v101, 0
  %111 = vmatpush.msra.mxu0 0.0
  %112 = vmatpush.msra.mxu0 0.0
  %113 = vmatpush.msra.mxu0 0.0
  %114 = vmatpush.msra.mxu0 0.0
  %115 = vmatpush.msra.mxu0 0.0
  %116 = vmatpush.msra.mxu0 0.0
  %117 = vmatpush.msra.mxu0 0.0
  %118 = vmatpush.msra.mxu0 0.0
  %119 = vmatpush.msra.mxu0 0.0
  %120 = vmatpush.msra.mxu0 0.0
  %121 = vmatpush.msra.mxu0 0.0
  %122 = vmatpush.msra.mxu0 0.0
  %123 = vmatpush.msra.mxu0 0.0
  %124 = vmatpush.msra.mxu0 0.0
  %125 = vmatpush.msra.mxu0 %v103
  %126 = vmatpush.msra.mxu0 %v96
  %127 = vmatmul.f32.gmra.mxu0 %v23
  %v128 = vpop.f32.mrf.mxu0
  %v129 = vadd.f32 0.0, %v128
  %130 = vdwg.mxu0
  %131 = vmatpush.msra.mxu0 0.0
  %132 = vmatpush.msra.mxu0 0.0
  %133 = vmatpush.msra.mxu0 0.0
  %134 = vmatpush.msra.mxu0 0.0
  %135 = vmatpush.msra.mxu0 0.0
  %136 = vmatpush.msra.mxu0 0.0
  %137 = vmatpush.msra.mxu0 0.0
  %138 = vmatpush.msra.mxu0 0.0
  %139 = vmatpush.msra.mxu0 0.0
  %140 = vmatpush.msra.mxu0 0.0
  %141 = vmatpush.msra.mxu0 0.0
  %142 = vmatpush.msra.mxu0 0.0
  %143 = vmatpush.msra.mxu0 0.0
  %144 = vmatpush.msra.mxu0 0.0
  %145 = vmatpush.msra.mxu0 %v106
  %146 = vmatpush.msra.mxu0 %v97
  %147 = vmatmul.f32.gmra.mxu0 %v23
  %v148 = vpop.f32.mrf.mxu0
  %v149 = vadd.f32 0.0, %v148
  %150 = vdwg.mxu0
  %151 = vmatpush.msra.mxu0 0.0
  %152 = vmatpush.msra.mxu0 0.0
  %153 = vmatpush.msra.mxu0 0.0
  %154 = vmatpush.msra.mxu0 0.0
  %155 = vmatpush.msra.mxu0 0.0
  %156 = vmatpush.msra.mxu0 0.0
  %157 = vmatpush.msra.mxu0 0.0
  %158 = vmatpush.msra.mxu0 0.0
  %159 = vmatpush.msra.mxu0 0.0
  %160 = vmatpush.msra.mxu0 0.0
  %161 = vmatpush.msra.mxu0 0.0
  %162 = vmatpush.msra.mxu0 0.0
  %163 = vmatpush.msra.mxu0 0.0
  %164 = vmatpush.msra.mxu0 0.0
  %165 = vmatpush.msra.mxu0 %v109
  %166 = vmatpush.msra.mxu0 %v98
  %167 = vmatmul.f32.gmra.mxu0 %v23
  %v168 = vpop.f32.mrf.mxu0
  %v169 = vadd.f32 0.0, %v168
  %170 = vdwg.mxu0
  %v171 = vmax.f32 %v53, %v129
  %v172 = vmax.f32 %v73, %v149
  %v173 = vmax.f32 %v93, %v169
  %s174 = scalar_lea.vmem %s0, 96
  %v175 = vld [vmem:[%s174] sm:$0xff]
  %v176 = vld [vmem:[%s174 + $0x8] sm:$0xff]
  %v177 = vld [vmem:[%s174 + $0x10] sm:$0xff]
  %v178 = vld [vmem:[%s174 + $0x18] sm:$0x1]
  %v179 = vld [vmem:[%s174 + $0x20] sm:$0x1]
  %v180 = vld [vmem:[%s174 + $0x28] sm:$0x1]
  %v182 = vsel %vm25, %v178, 0
  %v185 = vsel %vm25, %v179, 0
  %v188 = vsel %vm25, %v180, 0
  %190 = vmatpush.msra.mxu0 0.0
  %191 = vmatpush.msra.mxu0 0.0
  %192 = vmatpush.msra.mxu0 0.0
  %193 = vmatpush.msra.mxu0 0.0
  %194 = vmatpush.msra.mxu0 0.0
  %195 = vmatpush.msra.mxu0 0.0
  %196 = vmatpush.msra.mxu0 0.0
  %197 = vmatpush.msra.mxu0 0.0
  %198 = vmatpush.msra.mxu0 0.0
  %199 = vmatpush.msra.mxu0 0.0
  %200 = vmatpush.msra.mxu0 0.0
  %201 = vmatpush.msra.mxu0 0.0
  %202 = vmatpush.msra.mxu0 0.0
  %203 = vmatpush.msra.mxu0 0.0
  %204 = vmatpush.msra.mxu0 %v182
  %205 = vmatpush.msra.mxu0 %v175
  %206 = vmatmul.f32.gmra.mxu0 %v23
  %v207 = vpop.f32.mrf.mxu0
  %v208 = vadd.f32 0.0, %v207
  %209 = vdwg.mxu0
  %210 = vmatpush.msra.mxu0 0.0
  %211 = vmatpush.msra.mxu0 0.0
  %212 = vmatpush.msra.mxu0 0.0
  %213 = vmatpush.msra.mxu0 0.0
  %214 = vmatpush.msra.mxu0 0.0
  %215 = vmatpush.msra.mxu0 0.0
  %216 = vmatpush.msra.mxu0 0.0
  %217 = vmatpush.msra.mxu0 0.0
  %218 = vmatpush.msra.mxu0 0.0
  %219 = vmatpush.msra.mxu0 0.0
  %220 = vmatpush.msra.mxu0 0.0
  %221 = vmatpush.msra.mxu0 0.0
  %222 = vmatpush.msra.mxu0 0.0
  %223 = vmatpush.msra.mxu0 0.0
  %224 = vmatpush.msra.mxu0 %v185
  %225 = vmatpush.msra.mxu0 %v176
  %226 = vmatmul.f32.gmra.mxu0 %v23
  %v227 = vpop.f32.mrf.mxu0
  %v228 = vadd.f32 0.0, %v227
  %229 = vdwg.mxu0
  %230 = vmatpush.msra.mxu0 0.0
  %231 = vmatpush.msra.mxu0 0.0
  %232 = vmatpush.msra.mxu0 0.0
  %233 = vmatpush.msra.mxu0 0.0
  %234 = vmatpush.msra.mxu0 0.0
  %235 = vmatpush.msra.mxu0 0.0
  %236 = vmatpush.msra.mxu0 0.0
  %237 = vmatpush.msra.mxu0 0.0
  %238 = vmatpush.msra.mxu0 0.0
  %239 = vmatpush.msra.mxu0 0.0
  %240 = vmatpush.msra.mxu0 0.0
  %241 = vmatpush.msra.mxu0 0.0
  %242 = vmatpush.msra.mxu0 0.0
  %243 = vmatpush.msra.mxu0 0.0
  %244 = vmatpush.msra.mxu0 %v188
  %245 = vmatpush.msra.mxu0 %v177
  %246 = vmatmul.f32.gmra.mxu0 %v23
  %v247 = vpop.f32.mrf.mxu0
  %v248 = vadd.f32 0.0, %v247
  %249 = vdwg.mxu0
  %v250 = vmax.f32 %v171, %v208
  %v251 = vmax.f32 %v172, %v228
  %v252 = vmax.f32 %v173, %v248
  %s253 = scalar_lea.vmem %s0, 144
  %v254 = vld [vmem:[%s253] sm:$0xff]
  %v255 = vld [vmem:[%s253 + $0x8] sm:$0xff]
  %v256 = vld [vmem:[%s253 + $0x10] sm:$0xff]
  %v257 = vld [vmem:[%s253 + $0x18] sm:$0x1]
  %v258 = vld [vmem:[%s253 + $0x20] sm:$0x1]
  %v259 = vld [vmem:[%s253 + $0x28] sm:$0x1]
  %v261 = vsel %vm25, %v257, 0
  %v264 = vsel %vm25, %v258, 0
  %v267 = vsel %vm25, %v259, 0
  %269 = vmatpush.msra.mxu0 0.0
  %270 = vmatpush.msra.mxu0 0.0
  %271 = vmatpush.msra.mxu0 0.0
  %272 = vmatpush.msra.mxu0 0.0
  %273 = vmatpush.msra.mxu0 0.0
  %274 = vmatpush.msra.mxu0 0.0
  %275 = vmatpush.msra.mxu0 0.0
  %276 = vmatpush.msra.mxu0 0.0
  %277 = vmatpush.msra.mxu0 0.0
  %278 = vmatpush.msra.mxu0 0.0
  %279 = vmatpush.msra.mxu0 0.0
  %280 = vmatpush.msra.mxu0 0.0
  %281 = vmatpush.msra.mxu0 0.0
  %282 = vmatpush.msra.mxu0 0.0
  %283 = vmatpush.msra.mxu0 %v261
  %284 = vmatpush.msra.mxu0 %v254
  %285 = vmatmul.f32.gmra.mxu0 %v23
  %v286 = vpop.f32.mrf.mxu0
  %v287 = vadd.f32 0.0, %v286
  %288 = vdwg.mxu0
  %289 = vmatpush.msra.mxu0 0.0
  %290 = vmatpush.msra.mxu0 0.0
  %291 = vmatpush.msra.mxu0 0.0
  %292 = vmatpush.msra.mxu0 0.0
  %293 = vmatpush.msra.mxu0 0.0
  %294 = vmatpush.msra.mxu0 0.0
  %295 = vmatpush.msra.mxu0 0.0
  %296 = vmatpush.msra.mxu0 0.0
  %297 = vmatpush.msra.mxu0 0.0
  %298 = vmatpush.msra.mxu0 0.0
  %299 = vmatpush.msra.mxu0 0.0
  %300 = vmatpush.msra.mxu0 0.0
  %301 = vmatpush.msra.mxu0 0.0
  %302 = vmatpush.msra.mxu0 0.0
  %303 = vmatpush.msra.mxu0 %v264
  %304 = vmatpush.msra.mxu0 %v255
  %305 = vmatmul.f32.gmra.mxu0 %v23
  %v306 = vpop.f32.mrf.mxu0
  %v307 = vadd.f32 0.0, %v306
  %308 = vdwg.mxu0
  %309 = vmatpush.msra.mxu0 0.0
  %310 = vmatpush.msra.mxu0 0.0
  %311 = vmatpush.msra.mxu0 0.0
  %312 = vmatpush.msra.mxu0 0.0
  %313 = vmatpush.msra.mxu0 0.0
  %314 = vmatpush.msra.mxu0 0.0
  %315 = vmatpush.msra.mxu0 0.0
  %316 = vmatpush.msra.mxu0 0.0
  %317 = vmatpush.msra.mxu0 0.0
  %318 = vmatpush.msra.mxu0 0.0
  %319 = vmatpush.msra.mxu0 0.0
  %320 = vmatpush.msra.mxu0 0.0
  %321 = vmatpush.msra.mxu0 0.0
  %322 = vmatpush.msra.mxu0 0.0
  %323 = vmatpush.msra.mxu0 %v267
  %324 = vmatpush.msra.mxu0 %v256
  %325 = vmatmul.f32.gmra.mxu0 %v23
  %v326 = vpop.f32.mrf.mxu0
  %v327 = vadd.f32 0.0, %v326
  %328 = vdwg.mxu0
  %v329 = vmax.f32 %v250, %v287
  %v330 = vmax.f32 %v251, %v307
  %v331 = vmax.f32 %v252, %v327
  %v332 = vld [vmem:[%s2] sm:$0xff]
  %334 = vset.pattern.permute.xlu0 0
  %335 = vperm.xlu0 %334, %v332
  %v336 = vpop.permute.xlu0 %335
  %v338 = vadd.f32 %v329, %v336
  %v339 = vadd.f32 %v330, %v336
  %v340 = vadd.f32 %v331, %v336
  %v341 = vmax.f32 %v338, 0.0
  %v342 = vmax.f32 %v339, 0.0
  %v343 = vmax.f32 %v340, 0.0
  %344 = vst [vmem:[%s3] sm:$0xff] %v341
  %345 = vst [vmem:[%s3 + $0x8] sm:$0xff] %v342
  %vm346 = vcmask 670720
  %347 = vst.msk [vmem:[%s3 + $0x10] sm:$0xff] %vm346, %v343
  // Predicated region
  $region14: #{simple_cnn_forward.3} parent=0 // pred_check
    _
  $region15: #{simple_cnn_forward.3} parent=0 // pred_check_branch
    %349 = sbr.rel (0) target = $region17
  $region16: #{simple_cnn_forward.3} parent=0 // pred_region
    _
  $region17: #{simple_cnn_forward.3} parent=0 // pred_fallthru
    _
  // Predicated region
  $region18: #{simple_cnn_forward.3} parent=0 // pred_check
    _
  $region19: #{simple_cnn_forward.3} parent=0 // pred_check_branch
    %351 = sbr.rel (0) target = $region21
  $region20: #{simple_cnn_forward.3} parent=0 // pred_region
    _
  $region21: #{simple_cnn_forward.3} parent=0 // pred_fallthru
    _

// kernel: simple_cnn_forward.4
$region0: #{simple_cnn_forward.4}
  #allocation0 [shape = 'u32[]', space=smem, size = 0x4, offset = 0x4, fixed_abs, tag = 'smem constant byte address 0x4 - core index']
  #allocation1 [shape = 'u32[72,128]{1,0:T(1,128)}', space=vmem, size = 0x9000, scoped, tag = 'internal scratch']
  %s0 = inlined_call_operand.vmem [shape: f32[4,72,50], index: 0, kind: input, shape index: {}]
  %s1 = inlined_call_operand.vmem [shape: f32[16,72], index: 1, kind: input, shape index: {}]
  %s2 = inlined_call_operand.vmem [shape: f32[16,1], index: 2, kind: input, shape index: {}]
  %s3 = inlined_call_operand.vmem [shape: f32[16,50], index: 3, kind: output, shape index: {}]
  %s4 = sld [smem:[#allocation0]]
  $region22: #{simple_cnn_forward.4} parent=0
    _
  %s6 = ssub.s32 1, %s4
  %s7 = scalar_select 0, %s6, %s4
  // Predicated region
  $region2: #{simple_cnn_forward.4} parent=0 // pred_check
    _
  $region3: #{simple_cnn_forward.4} parent=0 // pred_check_branch
    %9 = sbr.rel (0) target = $region5
  $region4: #{simple_cnn_forward.4} parent=0 // pred_region
    _
  $region5: #{simple_cnn_forward.4} parent=0 // pred_fallthru
    _
  // Predicated region
  $region6: #{simple_cnn_forward.4} parent=0 // pred_check
    _
  $region7: #{simple_cnn_forward.4} parent=0 // pred_check_branch
    %11 = sbr.rel (0) target = $region9
  $region8: #{simple_cnn_forward.4} parent=0 // pred_region
    _
  $region9: #{simple_cnn_forward.4} parent=0 // pred_fallthru
    _
  // Predicated region
  $region10: #{simple_cnn_forward.4} parent=0 // pred_check
    _
  $region11: #{simple_cnn_forward.4} parent=0 // pred_check_branch
    %13 = sbr.rel (0) target = $region13
  $region12: #{simple_cnn_forward.4} parent=0 // pred_region
    _
  $region13: #{simple_cnn_forward.4} parent=0 // pred_fallthru
    _
  %v14 = vld [vmem:[%s1] sm:$0xff]
  %v15 = vld [vmem:[%s1 + $0x8] sm:$0xff]
  %v16 = vld [vmem:[%s0] sm:$0xff]
  %v17 = vld [vmem:[%s0 + $0x8] sm:$0xff]
  %v18 = vld [vmem:[%s0 + $0x10] sm:$0xff]
  %v19 = vld [vmem:[%s0 + $0x18] sm:$0xff]
  %v20 = vld [vmem:[%s0 + $0x20] sm:$0xff]
  %v21 = vld [vmem:[%s0 + $0x28] sm:$0xff]
  %v22 = vld [vmem:[%s0 + $0x30] sm:$0xff]
  %v23 = vld [vmem:[%s0 + $0x38] sm:$0xff]
  %v24 = vld [vmem:[%s0 + $0x40] sm:$0xff]
  %vm25 = vcmask 588800
  %v27 = vsel %vm25, %v14, 0
  %v30 = vsel %vm25, %v15, 0
  %32 = vmatpush.msra.mxu0 0.0
  %33 = vmatpush.msra.mxu0 0.0
  %34 = vmatpush.msra.mxu0 0.0
  %35 = vmatpush.msra.mxu0 0.0
  %36 = vmatpush.msra.mxu0 0.0
  %37 = vmatpush.msra.mxu0 0.0
  %38 = vmatpush.msra.mxu0 0.0
  %39 = vmatpush.msra.mxu0 %v24
  %40 = vmatpush.msra.mxu0 %v23
  %41 = vmatpush.msra.mxu0 %v22
  %42 = vmatpush.msra.mxu0 %v21
  %43 = vmatpush.msra.mxu0 %v20
  %44 = vmatpush.msra.mxu0 %v19
  %45 = vmatpush.msra.mxu0 %v18
  %46 = vmatpush.msra.mxu0 %v17
  %47 = vmatpush.msra.mxu0 %v16
  %48 = vmatmul.f32.gmra.mxu0 %v27
  %v49 = vpop.f32.mrf.mxu0
  %v50 = vadd.f32 0.0, %v49
  %51 = vmatmul.f32.gmra.mxu0 %v30
  %v52 = vpop.f32.mrf.mxu0
  %v53 = vadd.f32 0.0, %v52
  %54 = vdwg.mxu0
  %s55 = scalar_lea.vmem %s0, 72
  %v56 = vld [vmem:[%s55] sm:$0xff]
  %v57 = vld [vmem:[%s55 + $0x8] sm:$0xff]
  %v58 = vld [vmem:[%s55 + $0x10] sm:$0xff]
  %v59 = vld [vmem:[%s55 + $0x18] sm:$0xff]
  %v60 = vld [vmem:[%s55 + $0x20] sm:$0xff]
  %v61 = vld [vmem:[%s55 + $0x28] sm:$0xff]
  %v62 = vld [vmem:[%s55 + $0x30] sm:$0xff]
  %v63 = vld [vmem:[%s55 + $0x38] sm:$0xff]
  %v64 = vld [vmem:[%s55 + $0x40] sm:$0xff]
  %65 = vmatpush.msra.mxu0 0.0
  %66 = vmatpush.msra.mxu0 0.0
  %67 = vmatpush.msra.mxu0 0.0
  %68 = vmatpush.msra.mxu0 0.0
  %69 = vmatpush.msra.mxu0 0.0
  %70 = vmatpush.msra.mxu0 0.0
  %71 = vmatpush.msra.mxu0 0.0
  %72 = vmatpush.msra.mxu0 %v64
  %73 = vmatpush.msra.mxu0 %v63
  %74 = vmatpush.msra.mxu0 %v62
  %75 = vmatpush.msra.mxu0 %v61
  %76 = vmatpush.msra.mxu0 %v60
  %77 = vmatpush.msra.mxu0 %v59
  %78 = vmatpush.msra.mxu0 %v58
  %79 = vmatpush.msra.mxu0 %v57
  %80 = vmatpush.msra.mxu0 %v56
  %81 = vmatmul.f32.gmra.mxu0 %v27
  %v82 = vpop.f32.mrf.mxu0
  %v83 = vadd.f32 0.0, %v82
  %84 = vmatmul.f32.gmra.mxu0 %v30
  %v85 = vpop.f32.mrf.mxu0
  %v86 = vadd.f32 0.0, %v85
  %87 = vdwg.mxu0
  %v88 = vmax.f32 %v50, %v83
  %v89 = vmax.f32 %v53, %v86
  %s90 = scalar_lea.vmem %s0, 144
  %v91 = vld [vmem:[%s90] sm:$0xff]
  %v92 = vld [vmem:[%s90 + $0x8] sm:$0xff]
  %v93 = vld [vmem:[%s90 + $0x10] sm:$0xff]
  %v94 = vld [vmem:[%s90 + $0x18] sm:$0xff]
  %v95 = vld [vmem:[%s90 + $0x20] sm:$0xff]
  %v96 = vld [vmem:[%s90 + $0x28] sm:$0xff]
  %v97 = vld [vmem:[%s90 + $0x30] sm:$0xff]
  %v98 = vld [vmem:[%s90 + $0x38] sm:$0xff]
  %v99 = vld [vmem:[%s90 + $0x40] sm:$0xff]
  %100 = vmatpush.msra.mxu0 0.0
  %101 = vmatpush.msra.mxu0 0.0
  %102 = vmatpush.msra.mxu0 0.0
  %103 = vmatpush.msra.mxu0 0.0
  %104 = vmatpush.msra.mxu0 0.0
  %105 = vmatpush.msra.mxu0 0.0
  %106 = vmatpush.msra.mxu0 0.0
  %107 = vmatpush.msra.mxu0 %v99
  %108 = vmatpush.msra.mxu0 %v98
  %109 = vmatpush.msra.mxu0 %v97
  %110 = vmatpush.msra.mxu0 %v96
  %111 = vmatpush.msra.mxu0 %v95
  %112 = vmatpush.msra.mxu0 %v94
  %113 = vmatpush.msra.mxu0 %v93
  %114 = vmatpush.msra.mxu0 %v92
  %115 = vmatpush.msra.mxu0 %v91
  %116 = vmatmul.f32.gmra.mxu0 %v27
  %v117 = vpop.f32.mrf.mxu0
  %v118 = vadd.f32 0.0, %v117
  %119 = vmatmul.f32.gmra.mxu0 %v30
  %v120 = vpop.f32.mrf.mxu0
  %v121 = vadd.f32 0.0, %v120
  %122 = vdwg.mxu0
  %v123 = vmax.f32 %v88, %v118
  %v124 = vmax.f32 %v89, %v121
  %s125 = scalar_lea.vmem %s0, 216
  %v126 = vld [vmem:[%s125] sm:$0xff]
  %v127 = vld [vmem:[%s125 + $0x8] sm:$0xff]
  %v128 = vld [vmem:[%s125 + $0x10] sm:$0xff]
  %v129 = vld [vmem:[%s125 + $0x18] sm:$0xff]
  %v130 = vld [vmem:[%s125 + $0x20] sm:$0xff]
  %v131 = vld [vmem:[%s125 + $0x28] sm:$0xff]
  %v132 = vld [vmem:[%s125 + $0x30] sm:$0xff]
  %v133 = vld [vmem:[%s125 + $0x38] sm:$0xff]
  %v134 = vld [vmem:[%s125 + $0x40] sm:$0xff]
  %135 = vmatpush.msra.mxu0 0.0
  %136 = vmatpush.msra.mxu0 0.0
  %137 = vmatpush.msra.mxu0 0.0
  %138 = vmatpush.msra.mxu0 0.0
  %139 = vmatpush.msra.mxu0 0.0
  %140 = vmatpush.msra.mxu0 0.0
  %141 = vmatpush.msra.mxu0 0.0
  %142 = vmatpush.msra.mxu0 %v134
  %143 = vmatpush.msra.mxu0 %v133
  %144 = vmatpush.msra.mxu0 %v132
  %145 = vmatpush.msra.mxu0 %v131
  %146 = vmatpush.msra.mxu0 %v130
  %147 = vmatpush.msra.mxu0 %v129
  %148 = vmatpush.msra.mxu0 %v128
  %149 = vmatpush.msra.mxu0 %v127
  %150 = vmatpush.msra.mxu0 %v126
  %151 = vmatmul.f32.gmra.mxu0 %v27
  %v152 = vpop.f32.mrf.mxu0
  %v153 = vadd.f32 0.0, %v152
  %154 = vmatmul.f32.gmra.mxu0 %v30
  %v155 = vpop.f32.mrf.mxu0
  %v156 = vadd.f32 0.0, %v155
  %157 = vdwg.mxu0
  %v158 = vmax.f32 %v123, %v153
  %v159 = vmax.f32 %v124, %v156
  %v160 = vld [vmem:[%s2] sm:$0xff]
  %v161 = vld [vmem:[%s2 + $0x8] sm:$0xff]
  %163 = vset.pattern.permute.xlu0 0
  %164 = vperm.xlu0 %163, %v160
  %v165 = vpop.permute.xlu0 %164
  %168 = vset.pattern.permute.xlu0 0
  %169 = vperm.xlu0 %168, %v161
  %v170 = vpop.permute.xlu0 %169
  %v172 = vadd.f32 %v158, %v165
  %v173 = vadd.f32 %v159, %v170
  %v174 = vmax.f32 %v172, 0.0
  %v175 = vmax.f32 %v173, 0.0
  %vm176 = vcmask 408576
  %177 = vst.msk [vmem:[%s3] sm:$0xff] %vm176, %v174
  %178 = vst.msk [vmem:[%s3 + $0x8] sm:$0xff] %vm176, %v175
  // Predicated region
  $region14: #{simple_cnn_forward.4} parent=0 // pred_check
    _
  $region15: #{simple_cnn_forward.4} parent=0 // pred_check_branch
    %180 = sbr.rel (0) target = $region17
  $region16: #{simple_cnn_forward.4} parent=0 // pred_region
    _
  $region17: #{simple_cnn_forward.4} parent=0 // pred_fallthru
    _
  // Predicated region
  $region18: #{simple_cnn_forward.4} parent=0 // pred_check
    _
  $region19: #{simple_cnn_forward.4} parent=0 // pred_check_branch
    %182 = sbr.rel (0) target = $region21
  $region20: #{simple_cnn_forward.4} parent=0 // pred_region
    _
  $region21: #{simple_cnn_forward.4} parent=0 // pred_fallthru
    _

// kernel: simple_cnn_forward.5
$region0: #{simple_cnn_forward.5}
  #allocation0 [shape = 'u32[]', space=smem, size = 0x4, offset = 0x4, fixed_abs, tag = 'smem constant byte address 0x4 - core index']
  #allocation1 [shape = 'u32[72,128]{1,0:T(1,128)}', space=vmem, size = 0x9000, scoped, tag = 'internal scratch']
  %s0 = inlined_call_operand.vmem [shape: f32[2,400], index: 0, kind: input, shape index: {}]
  %s1 = inlined_call_operand.vmem [shape: f32[400,32], index: 1, kind: input, shape index: {}]
  %s2 = inlined_call_operand.vmem [shape: f32[1,32], index: 2, kind: input, shape index: {}]
  %s3 = inlined_call_operand.vmem [shape: f32[32,10], index: 3, kind: input, shape index: {}]
  %s4 = inlined_call_operand.vmem [shape: f32[1,10], index: 4, kind: input, shape index: {}]
  %s5 = inlined_call_operand.hbm [shape: f32[2,10], index: 5, kind: output, shape index: {}]
  %s6 = sld [smem:[#allocation0]]
  $region30: #{simple_cnn_forward.5} parent=0
    _
  %s8 = ssub.s32 1, %s6
  %s9 = scalar_select 0, %s8, %s6
  $region1: #{simple_cnn_forward.5} parent=0
    #allocation2 [shape = 'u8[1024]{0}', space=vmem, size = 0x400, scoped, tag = 'output window, operand 0, single buffered']
    #allocation3 [shape = 's32[1]{0}', space=sflag, size = 0x4, scoped, tag = 'scoped memory for simple_cnn_forward.5']
    %10 = vsyncpa [#allocation3], 0
    // Predicated region
    $region2: #{simple_cnn_forward.5} parent=1 // pred_check
      _
    $region3: #{simple_cnn_forward.5} parent=1 // pred_check_branch
      %12 = sbr.rel (0) target = $region5
    $region4: #{simple_cnn_forward.5} parent=1 // pred_region
      _
    $region5: #{simple_cnn_forward.5} parent=1 // pred_fallthru
      _
    // Predicated region
    $region6: #{simple_cnn_forward.5} parent=1 // pred_check
      _
    $region7: #{simple_cnn_forward.5} parent=1 // pred_check_branch
      %14 = sbr.rel (0) target = $region9
    $region8: #{simple_cnn_forward.5} parent=1 // pred_region
      _
    $region9: #{simple_cnn_forward.5} parent=1 // pred_fallthru
      _
    // Predicated region
    $region10: #{simple_cnn_forward.5} parent=1 // pred_check
      _
    $region11: #{simple_cnn_forward.5} parent=1 // pred_check_branch
      %16 = sbr.rel (0) target = $region13
    $region12: #{simple_cnn_forward.5} parent=1 // pred_region
      _
    $region13: #{simple_cnn_forward.5} parent=1 // pred_fallthru
      _
    // Predicated region
    $region14: #{simple_cnn_forward.5} parent=1 // pred_check
      _
    $region15: #{simple_cnn_forward.5} parent=1 // pred_check_branch
      %18 = sbr.rel (0) target = $region17
    $region16: #{simple_cnn_forward.5} parent=1 // pred_region
      _
    $region17: #{simple_cnn_forward.5} parent=1 // pred_fallthru
      _
    // Predicated region
    $region18: #{simple_cnn_forward.5} parent=1 // pred_check
      _
    $region19: #{simple_cnn_forward.5} parent=1 // pred_check_branch
      %20 = sbr.rel (0) target = $region21
    $region20: #{simple_cnn_forward.5} parent=1 // pred_region
      _
    $region21: #{simple_cnn_forward.5} parent=1 // pred_fallthru
      _
    %v21 = vld [vmem:[%s0] sm:$0xff]
    %v22 = vld [vmem:[%s1] sm:$0xff]
    %v23 = vld [vmem:[%s1 + $0x8] sm:$0xff]
    %v24 = vld [vmem:[%s1 + $0x10] sm:$0xff]
    %v25 = vld [vmem:[%s1 + $0x18] sm:$0xff]
    %v26 = vld [vmem:[%s1 + $0x20] sm:$0xff]
    %v27 = vld [vmem:[%s1 + $0x28] sm:$0xff]
    %v28 = vld [vmem:[%s1 + $0x30] sm:$0xff]
    %v29 = vld [vmem:[%s1 + $0x38] sm:$0xff]
    %v30 = vld [vmem:[%s1 + $0x40] sm:$0xff]
    %v31 = vld [vmem:[%s1 + $0x48] sm:$0xff]
    %v32 = vld [vmem:[%s1 + $0x50] sm:$0xff]
    %v33 = vld [vmem:[%s1 + $0x58] sm:$0xff]
    %v34 = vld [vmem:[%s1 + $0x60] sm:$0xff]
    %v35 = vld [vmem:[%s1 + $0x68] sm:$0xff]
    %v36 = vld [vmem:[%s1 + $0x70] sm:$0xff]
    %v37 = vld [vmem:[%s1 + $0x78] sm:$0xff]
    %v38 = vld [vmem:[%s1 + $0x80] sm:$0xff]
    %v39 = vld [vmem:[%s1 + $0x88] sm:$0xff]
    %v40 = vld [vmem:[%s1 + $0x90] sm:$0xff]
    %v41 = vld [vmem:[%s1 + $0x98] sm:$0xff]
    %v42 = vld [vmem:[%s1 + $0xa0] sm:$0xff]
    %v43 = vld [vmem:[%s1 + $0xa8] sm:$0xff]
    %v44 = vld [vmem:[%s1 + $0xb0] sm:$0xff]
    %v45 = vld [vmem:[%s1 + $0xb8] sm:$0xff]
    %v46 = vld [vmem:[%s1 + $0xc0] sm:$0xff]
    %v47 = vld [vmem:[%s1 + $0xc8] sm:$0xff]
    %v48 = vld [vmem:[%s1 + $0xd0] sm:$0xff]
    %v49 = vld [vmem:[%s1 + $0xd8] sm:$0xff]
    %v50 = vld [vmem:[%s1 + $0xe0] sm:$0xff]
    %v51 = vld [vmem:[%s1 + $0xe8] sm:$0xff]
    %v52 = vld [vmem:[%s1 + $0xf0] sm:$0xff]
    %v53 = vld [vmem:[%s1 + $0xf8] sm:$0xff]
    %v54 = vld [vmem:[%s1 + $0x100] sm:$0xff]
    %v55 = vld [vmem:[%s1 + $0x108] sm:$0xff]
    %v56 = vld [vmem:[%s1 + $0x110] sm:$0xff]
    %v57 = vld [vmem:[%s1 + $0x118] sm:$0xff]
    %v58 = vld [vmem:[%s1 + $0x120] sm:$0xff]
    %v59 = vld [vmem:[%s1 + $0x128] sm:$0xff]
    %v60 = vld [vmem:[%s1 + $0x130] sm:$0xff]
    %v61 = vld [vmem:[%s1 + $0x138] sm:$0xff]
    %v62 = vld [vmem:[%s1 + $0x140] sm:$0xff]
    %v63 = vld [vmem:[%s1 + $0x148] sm:$0xff]
    %v64 = vld [vmem:[%s1 + $0x150] sm:$0xff]
    %v65 = vld [vmem:[%s1 + $0x158] sm:$0xff]
    %v66 = vld [vmem:[%s1 + $0x160] sm:$0xff]
    %v67 = vld [vmem:[%s1 + $0x168] sm:$0xff]
    %v68 = vld [vmem:[%s1 + $0x170] sm:$0xff]
    %v69 = vld [vmem:[%s1 + $0x178] sm:$0xff]
    %v70 = vld [vmem:[%s1 + $0x180] sm:$0xff]
    %v71 = vld [vmem:[%s1 + $0x188] sm:$0xff]
    %v72 = vld [vmem:[%s2] sm:$0x1]
    %v74 = vperm.slane %v72, 0
    %77 = vst [vmem:[#allocation1] ss:$4 sm:$0xff] %v21
    %v78 = vld.sshfl [vmem:[#allocation1] sm:$0xff pattern:$0x73625140]
    %v79 = vld.sshfl [vmem:[#allocation1 + $0x8] sm:$0xff pattern:$0x73625140]
    %v80 = vld.sshfl [vmem:[#allocation1 + $0x10] sm:$0xff pattern:$0x73625140]
    %v81 = vld.sshfl [vmem:[#allocation1 + $0x18] sm:$0xff pattern:$0x73625140]
    %vm85 = vcmask 130048
    %v86 = vsel %vm85, %v81, 0
    %88 = vmatpush.msra.mxu0 %v37
    %89 = vmatpush.msra.mxu0 %v36
    %90 = vmatpush.msra.mxu0 %v35
    %91 = vmatpush.msra.mxu0 %v34
    %92 = vmatpush.msra.mxu0 %v33
    %93 = vmatpush.msra.mxu0 %v32
    %94 = vmatpush.msra.mxu0 %v31
    %95 = vmatpush.msra.mxu0 %v30
    %96 = vmatpush.msra.mxu0 %v29
    %97 = vmatpush.msra.mxu0 %v28
    %98 = vmatpush.msra.mxu0 %v27
    %99 = vmatpush.msra.mxu0 %v26
    %100 = vmatpush.msra.mxu0 %v25
    %101 = vmatpush.msra.mxu0 %v24
    %102 = vmatpush.msra.mxu0 %v23
    %103 = vmatpush.msra.mxu0 %v22
    %104 = vmatmul.f32.gmra.mxu0 %v78
    %v105 = vpop.f32.mrf.mxu0
    %v106 = vadd.f32 %v74, %v105
    %107 = vdwg.mxu0
    %108 = vmatpush.msra.mxu0 %v53
    %109 = vmatpush.msra.mxu0 %v52
    %110 = vmatpush.msra.mxu0 %v51
    %111 = vmatpush.msra.mxu0 %v50
    %112 = vmatpush.msra.mxu0 %v49
    %113 = vmatpush.msra.mxu0 %v48
    %114 = vmatpush.msra.mxu0 %v47
    %115 = vmatpush.msra.mxu0 %v46
    %116 = vmatpush.msra.mxu0 %v45
    %117 = vmatpush.msra.mxu0 %v44
    %118 = vmatpush.msra.mxu0 %v43
    %119 = vmatpush.msra.mxu0 %v42
    %120 = vmatpush.msra.mxu0 %v41
    %121 = vmatpush.msra.mxu0 %v40
    %122 = vmatpush.msra.mxu0 %v39
    %123 = vmatpush.msra.mxu0 %v38
    %124 = vmatmul.f32.gmra.mxu0 %v79
    %v125 = vpop.f32.mrf.mxu0
    %v126 = vadd.f32 %v106, %v125
    %127 = vdwg.mxu0
    %128 = vmatpush.msra.mxu0 %v69
    %129 = vmatpush.msra.mxu0 %v68
    %130 = vmatpush.msra.mxu0 %v67
    %131 = vmatpush.msra.mxu0 %v66
    %132 = vmatpush.msra.mxu0 %v65
    %133 = vmatpush.msra.mxu0 %v64
    %134 = vmatpush.msra.mxu0 %v63
    %135 = vmatpush.msra.mxu0 %v62
    %136 = vmatpush.msra.mxu0 %v61
    %137 = vmatpush.msra.mxu0 %v60
    %138 = vmatpush.msra.mxu0 %v59
    %139 = vmatpush.msra.mxu0 %v58
    %140 = vmatpush.msra.mxu0 %v57
    %141 = vmatpush.msra.mxu0 %v56
    %142 = vmatpush.msra.mxu0 %v55
    %143 = vmatpush.msra.mxu0 %v54
    %144 = vmatmul.f32.gmra.mxu0 %v80
    %v145 = vpop.f32.mrf.mxu0
    %v146 = vadd.f32 %v126, %v145
    %147 = vdwg.mxu0
    %148 = vmatpush.msra.mxu0 0.0
    %149 = vmatpush.msra.mxu0 0.0
    %150 = vmatpush.msra.mxu0 0.0
    %151 = vmatpush.msra.mxu0 0.0
    %152 = vmatpush.msra.mxu0 0.0
    %153 = vmatpush.msra.mxu0 0.0
    %154 = vmatpush.msra.mxu0 0.0
    %155 = vmatpush.msra.mxu0 0.0
    %156 = vmatpush.msra.mxu0 0.0
    %157 = vmatpush.msra.mxu0 0.0
    %158 = vmatpush.msra.mxu0 0.0
    %159 = vmatpush.msra.mxu0 0.0
    %160 = vmatpush.msra.mxu0 0.0
    %161 = vmatpush.msra.mxu0 0.0
    %162 = vmatpush.msra.mxu0 %v71
    %163 = vmatpush.msra.mxu0 %v70
    %164 = vmatmul.f32.gmra.mxu0 %v86
    %v165 = vpop.f32.mrf.mxu0
    %v166 = vadd.f32 %v146, %v165
    %167 = vdwg.mxu0
    %v168 = vmax.f32 %v166, 0.0
    %v169 = vld [vmem:[%s3] sm:$0xff]
    %v170 = vld [vmem:[%s3 + $0x8] sm:$0xff]
    %v171 = vld [vmem:[%s3 + $0x10] sm:$0xff]
    %v172 = vld [vmem:[%s3 + $0x18] sm:$0xff]
    %v173 = vld [vmem:[%s4] sm:$0x1]
    %v175 = vperm.slane %v173, 0
    %vm177 = vcmask 261120
    %v179 = vsel %vm177, %v168, 0
    %181 = vmatpush.msra.mxu0 0.0
    %182 = vmatpush.msra.mxu0 0.0
    %183 = vmatpush.msra.mxu0 0.0
    %184 = vmatpush.msra.mxu0 0.0
    %185 = vmatpush.msra.mxu0 0.0
    %186 = vmatpush.msra.mxu0 0.0
    %187 = vmatpush.msra.mxu0 0.0
    %188 = vmatpush.msra.mxu0 0.0
    %189 = vmatpush.msra.mxu0 0.0
    %190 = vmatpush.msra.mxu0 0.0
    %191 = vmatpush.msra.mxu0 0.0
    %192 = vmatpush.msra.mxu0 0.0
    %193 = vmatpush.msra.mxu0 %v172
    %194 = vmatpush.msra.mxu0 %v171
    %195 = vmatpush.msra.mxu0 %v170
    %196 = vmatpush.msra.mxu0 %v169
    %197 = vmatmul.f32.gmra.mxu0 %v179
    %v198 = vpop.f32.mrf.mxu0
    %v199 = vadd.f32 %v175, %v198
    %200 = vdwg.mxu0
    %vm201 = vcmask 74752
    %202 = vst.msk [vmem:[#allocation2] sm:$0x3] %vm201, %v199
    // Predicated region
    $region22: #{simple_cnn_forward.5} parent=1 // pred_check
      _
    $region23: #{simple_cnn_forward.5} parent=1 // pred_check_branch
      %204 = sbr.rel (0) target = $region25
    $region24: #{simple_cnn_forward.5} parent=1 // pred_region
      %206 = vsyncadd [#allocation3], 0
      %s208 = sshll.u32 [#allocation2], 4
      %s209 = int_to_ptr.vmem [resolvable:$true] %s208
      %s210 = sshll.u32 %s5, 4
      %s211 = int_to_ptr.hbm [resolvable:$true] %s210
      %213 = dma.vmem_to_hbm [thread:$0]  %s209, 32, %s211, [#allocation3]
    $region25: #{simple_cnn_forward.5} parent=1 // pred_fallthru
      _
    // Predicated region
    $region26: #{simple_cnn_forward.5} parent=1 // pred_check
      _
    $region27: #{simple_cnn_forward.5} parent=1 // pred_check_branch
      %215 = sbr.rel (0) target = $region29
    $region28: #{simple_cnn_forward.5} parent=1 // pred_region
      %217 = dma.done [#allocation3], 32
    $region29: #{simple_cnn_forward.5} parent=1 // pred_fallthru
      _
    %218 = vsyncpa [#allocation3], 1

</llo_original>
